<compile_context>
chip_gen: v6e
topology: v6e:2x2x1
jax: 0.10.0
libtpu: 0.0.40
codegen_flags: <defaults>
</compile_context>

<pallas_src>
import jax
import jax.numpy as jnp
from jax.experimental import pallas as pl
from jax.experimental.pallas import tpu as pltpu

EPS = 1e-8  # tsl.epsilon


def _cdiv(a, b):
    return -(-a // b)


def _mincut_pool_kernel(sT_ref, s_ref, emb_ref, adj_ref, out_emb_ref, out_adj_ref):
    """One (batch-or-split, node-row-tile) grid step.

    out_emb[p] += s_tile^T @ emb_tile          -> (K, D)
    out_adj[p] += s_tile^T @ (adj_tile @ s)    -> (K, K)
    """
    f32 = jnp.float32
    t = pl.program_id(1)

    sT = sT_ref[...]            # (K, tn)  stream dtype (zero cols for pad rows)
    s = s_ref[...]              # (N, K)   stream dtype (full, tiny)
    emb = emb_ref[0]            # (tn, D)
    adj = adj_ref[0]            # (tn, N)  row tile of adj

    part_emb = jnp.dot(sT, emb, preferred_element_type=f32)                    # (K, D)
    tmp = jnp.dot(adj, s, preferred_element_type=f32)                          # (tn, K)
    part_adj = jnp.dot(sT, tmp.astype(sT.dtype), preferred_element_type=f32)   # (K, K)

    # Resident accumulation directly into the f32 output blocks (their block
    # index is constant along t): overwrite at t==0, accumulate afterwards.
    @pl.when(t == 0)
    def _():
        out_emb_ref[0] = part_emb
        out_adj_ref[0] = part_adj

    @pl.when(t > 0)
    def _():
        out_emb_ref[0] += part_emb
        out_adj_ref[0] += part_adj


def _vmem_caps():
    """(vmem request cap, per-adj-buffer byte target) — generation aware."""
    phys = 64 << 20  # conservative (v7x-class) fallback
    try:
        info = pltpu.get_tpu_info()
        phys = int(getattr(info, "vmem_capacity_bytes", phys))
    except Exception:
        pass
    if phys <= (64 << 20):            # v7x-class: 64 MiB physical per core
        return 52 << 20, 8 << 20
    return 100 << 20, 16 << 20        # v5e / v6e: 128 MiB physical


def _choose_tiling(N, D, K, itemsize, tn_arg, req_cap, adj_target):
    """Pick the node-row tile tn and the vmem_limit request."""
    headroom = 4 << 20  # Mosaic internal scratch etc.

    def footprint(tn_):
        stream = itemsize * (tn_ * N + tn_ * D + K * tn_ + N * K)
        outs = 4 * (K * D + K * K)
        return 2 * stream + 2 * outs  # double-buffered

    if tn_arg is not None:
        tn = int(tn_arg)
    else:
        tn = adj_target // max(N * itemsize, 1)
    tn = min(tn, 2048)
    if tn >= N:
        tn = N                                   # no tiling / no padding
    else:
        tn = max(128, (tn // 128) * 128)         # lane constraint for sT tile

    # Shrink tn until the double-buffered footprint fits the request cap
    # (never clamp the limit below the need).
    while footprint(tn) + headroom > req_cap:
        if tn == N and N > 128:
            tn = max(128, ((N - 1) // 128) * 128)
        elif tn > 128:
            tn -= 128
        else:
            break
    vmem_limit = int(min(req_cap, max(footprint(tn) + headroom, 16 << 20)))
    return tn, vmem_limit


def mincut_pool_forward(logits, emb, adj, n_clusters, *,
                        stream_dtype=jnp.bfloat16, tn=None):
    B, N, D = emb.shape
    K = n_clusters
    itemsize = jnp.dtype(stream_dtype).itemsize

    # ---- hard assignment (eval, hard=True): batch-invariant, done once -----
    amax = jnp.argmax(logits, axis=-1)                            # (N,)
    s_f32 = jax.nn.one_hot(amax, K, dtype=jnp.float32) + EPS      # (N, K)

    # ---- generation-aware VMEM budget & node-row tile ----------------------
    req_cap, adj_target = _vmem_caps()
    tn_tile, vmem_limit = _choose_tiling(N, D, K, itemsize, tn, req_cap, adj_target)

    # ---- B == 1: split node tiles across a parallel axis (v7x second TC) ---
    n_splits = 1
    if tn_tile < N:
        Np = _cdiv(N, tn_tile) * tn_tile
        if B == 1:
            Np2 = _cdiv(N, 2 * tn_tile) * (2 * tn_tile)
            if (Np2 - N) * 4 <= N:                # keep pad overhead small
                n_splits, Np = 2, Np2
    else:
        Np = N

    nt_total = Np // tn_tile
    T = nt_total // n_splits                      # node tiles per grid slot
    P = B * n_splits                              # leading (parallel) grid axis

    # ---- stream-dtype inputs, node axis zero-padded to Np ------------------
    pad = Np - N
    s_in = s_f32.astype(stream_dtype)                                       # (N, K)
    sT_in = jnp.pad(jnp.transpose(s_f32), ((0, 0), (0, pad))).astype(stream_dtype)  # (K, Np)
    emb_in = emb.astype(stream_dtype)
    adj_in = adj.astype(stream_dtype)
    if pad:
        emb_in = jnp.pad(emb_in, ((0, 0), (0, pad), (0, 0)))
        adj_in = jnp.pad(adj_in, ((0, 0), (0, pad), (0, 0)))

    if n_splits == 1:
        def b_idx(p, t):
            return p

        def row_idx(p, t):
            return t
    else:
        def b_idx(p, t):
            return 0

        def row_idx(p, t):
            return p * T + t

    out_emb, out_adj = pl.pallas_call(
        _mincut_pool_kernel,
        out_shape=(
            jax.ShapeDtypeStruct((P, K, D), jnp.float32),
            jax.ShapeDtypeStruct((P, K, K), jnp.float32),
        ),
        grid=(P, T),
        in_specs=[
            pl.BlockSpec((K, tn_tile), lambda p, t: (0, row_idx(p, t))),          # sT tile
            pl.BlockSpec((N, K), lambda p, t: (0, 0)),                            # s (full)
            pl.BlockSpec((1, tn_tile, D), lambda p, t: (b_idx(p, t), row_idx(p, t), 0)),
            pl.BlockSpec((1, tn_tile, N), lambda p, t: (b_idx(p, t), row_idx(p, t), 0)),
        ],
        out_specs=[
            pl.BlockSpec((1, K, D), lambda p, t: (p, 0, 0)),
            pl.BlockSpec((1, K, K), lambda p, t: (p, 0, 0)),
        ],
        compiler_params=pltpu.CompilerParams(
            dimension_semantics=("parallel", "arbitrary"),
            vmem_limit_bytes=vmem_limit),
    )(sT_in, s_in, emb_in, adj_in)

    if n_splits > 1:  # reduce the per-split partial sums
        out_emb = out_emb.reshape(B, n_splits, K, D).sum(axis=1)
        out_adj = out_adj.reshape(B, n_splits, K, K).sum(axis=1)

    # ---- tiny O(B*K^2) epilogue: zero diagonal + symmetric degree norm -----
    idx = jnp.arange(K)
    out_adj = out_adj.at[..., idx, idx].set(0.0)
    d = jnp.sqrt(jnp.sum(out_adj, axis=-1, keepdims=True)) + EPS
    out_adj = out_adj / d / jnp.swapaxes(d, -1, -2)

    # s_sample is identical for every batch element: broadcast in the wrapper
    s_sample = jnp.broadcast_to(s_f32, (B, N, K))
    # eval mode: regularizations are not computed
    return out_emb, out_adj, s_sample, (0.0, 0.0)


def _reference(logits, emb, adj, K):
    """Pure-JAX reference mirroring the PyTorch eval forward (f32-accurate)."""
    hi = jax.lax.Precision.HIGHEST
    amax = jnp.argmax(logits, axis=-1)
    s = jax.nn.one_hot(amax, K, dtype=jnp.float32) + EPS          # (N, K)
    sb = jnp.broadcast_to(s, (emb.shape[0],) + s.shape)           # (B, N, K)
    out_emb = jnp.einsum('bnk,bnd->bkd', sb, emb, precision=hi)
    out_adj = jnp.einsum('bnk,bnm,bmj->bkj', sb, adj, sb, precision=hi)
    idx = jnp.arange(K)
    out_adj = out_adj.at[..., idx, idx].set(0.0)
    d = jnp.sqrt(jnp.sum(out_adj, axis=-1, keepdims=True)) + EPS
    out_adj = out_adj / d / jnp.swapaxes(d, -1, -2)
    return out_emb, out_adj, sb


if __name__ == "__main__":
    def make_inputs(key, B, N, D, K):
        k1, k2, k3 = jax.random.split(key, 3)
        logits = jax.random.normal(k1, (N, K), dtype=jnp.float32)
        emb = jax.random.normal(k2, (B, N, D), dtype=jnp.float32)
        adj = jax.random.uniform(k3, (B, N, N), dtype=jnp.float32)
        adj = 0.5 * (adj + jnp.swapaxes(adj, -1, -2))   # symmetric, non-negative
        return logits, emb, adj

    # ---- 1) small shapes, f32 streaming: tight parity with the module ------
    B, N, D, K = 2, 16, 32, 8   # batch, n_nodes, emb_size, n_clusters
    logits, emb, adj = make_inputs(jax.random.PRNGKey(0), B, N, D, K)
    ref_emb, ref_adj, ref_s = _reference(logits, emb, adj, K)

    out_emb, out_adj, s_sample, losses = mincut_pool_forward(
        logits, emb, adj, K, stream_dtype=jnp.float32)
    jax.block_until_ready((out_emb, out_adj, s_sample))
    assert jnp.allclose(out_emb, ref_emb, atol=1e-4, rtol=1e-4)
    assert jnp.allclose(out_adj, ref_adj, atol=1e-4, rtol=1e-4)
    assert jnp.allclose(s_sample, ref_s, atol=1e-6)
    assert losses == (0.0, 0.0)

    # ---- 2) same shapes, default bf16 streaming (f32 accumulation) ---------
    out_emb_b, out_adj_b, s_sample_b, _ = mincut_pool_forward(logits, emb, adj, K)
    jax.block_until_ready((out_emb_b, out_adj_b))
    assert jnp.allclose(out_emb_b, ref_emb, atol=1e-1, rtol=5e-2)
    assert jnp.allclose(out_adj_b, ref_adj, atol=5e-2, rtol=5e-2)
    assert jnp.allclose(s_sample_b, ref_s, atol=1e-6)

    # ---- 3) non-divisible N -> zero-padded node tiles (tn=128, Np=256) -----
    B, N, D, K = 2, 200, 32, 8
    logits, emb, adj = make_inputs(jax.random.PRNGKey(1), B, N, D, K)
    ref_emb, ref_adj, _ = _reference(logits, emb, adj, K)
    out_emb_p, out_adj_p, _, _ = mincut_pool_forward(logits, emb, adj, K, tn=128)
    jax.block_until_ready((out_emb_p, out_adj_p))
    assert jnp.allclose(out_emb_p, ref_emb, atol=2e-1, rtol=5e-2)
    assert jnp.allclose(out_adj_p, ref_adj, atol=5e-2, rtol=5e-2)

    # ---- 4) B == 1 -> node tiles split across the parallel grid axis -------
    B, N, D, K = 1, 256, 32, 8
    logits, emb, adj = make_inputs(jax.random.PRNGKey(2), B, N, D, K)
    ref_emb, ref_adj, _ = _reference(logits, emb, adj, K)
    out_emb_s, out_adj_s, _, _ = mincut_pool_forward(logits, emb, adj, K, tn=128)
    jax.block_until_ready((out_emb_s, out_adj_s))
    assert jnp.allclose(out_emb_s, ref_emb, atol=2e-1, rtol=5e-2)
    assert jnp.allclose(out_adj_s, ref_adj, atol=5e-2, rtol=5e-2)

    print("KERNEL_OK")
</pallas_src>

<mosaic_0001>
module attributes {stable_mosaic.version = 11 : i64} {
  func.func @_mincut_pool_kernel(%arg0: i32, %arg1: i32, %arg2: memref<8x16xf32, #tpu.memory_space<vmem>>, %arg3: memref<16x8xf32, #tpu.memory_space<vmem>>, %arg4: memref<1x16x32xf32, #tpu.memory_space<vmem>>, %arg5: memref<1x16x16xf32, #tpu.memory_space<vmem>>, %arg6: memref<1x8x32xf32, #tpu.memory_space<vmem>>, %arg7: memref<1x8x8xf32, #tpu.memory_space<vmem>>) attributes {dimension_semantics = [#tpu.dimension_semantics<parallel>, #tpu.dimension_semantics<arbitrary>], iteration_bounds = array<i64: 2, 1>, scalar_prefetch = 0 : i64, scratch_operands = 0 : i64, tpu.core_type = #tpu.core_type<tc>, window_params = [{transform_indices = @transform_0, window_bounds = array<i64: 8, 16>}, {pipeline_mode = #tpu.pipeline_mode<synchronous>, transform_indices = @transform_1, window_bounds = array<i64: 16, 8>}, {transform_indices = @transform_2, window_bounds = array<i64: 1, 16, 32>}, {transform_indices = @transform_3, window_bounds = array<i64: 1, 16, 16>}, {transform_indices = @transform_4, window_bounds = array<i64: 1, 8, 32>}, {transform_indices = @transform_5, window_bounds = array<i64: 1, 8, 8>}]} {
    %c0 = arith.constant 0 : index
    %c0_0 = arith.constant 0 : index
    %0 = vector.load %arg2[%c0, %c0_0] : memref<8x16xf32, #tpu.memory_space<vmem>>, vector<8x16xf32>
    %c0_1 = arith.constant 0 : index
    %c0_2 = arith.constant 0 : index
    %1 = vector.load %arg3[%c0_1, %c0_2] : memref<16x8xf32, #tpu.memory_space<vmem>>, vector<16x8xf32>
    %c0_3 = arith.constant 0 : index
    %c0_4 = arith.constant 0 : index
    %c0_5 = arith.constant 0 : index
    %2 = vector.load %arg4[%c0_3, %c0_4, %c0_5] : memref<1x16x32xf32, #tpu.memory_space<vmem>>, vector<1x16x32xf32>
    %3 = vector.shape_cast %2 : vector<1x16x32xf32> to vector<16x32xf32>
    %c0_6 = arith.constant 0 : index
    %c0_7 = arith.constant 0 : index
    %c0_8 = arith.constant 0 : index
    %4 = vector.load %arg5[%c0_6, %c0_7, %c0_8] : memref<1x16x16xf32, #tpu.memory_space<vmem>>, vector<1x16x16xf32>
    %5 = vector.shape_cast %4 : vector<1x16x16xf32> to vector<16x16xf32>
    %cst = arith.constant dense<0.000000e+00> : vector<8x32xf32>
    %6 = tpu.matmul %0, %3, %cst {dimension_numbers = #tpu.dot_dimension_numbers<[1], [0], [0], [1], [0, 0, 1, 1], [], []>} : vector<8x16xf32>, vector<16x32xf32>, vector<8x32xf32> -> vector<8x32xf32>
    %cst_9 = arith.constant dense<0.000000e+00> : vector<16x8xf32>
    %7 = tpu.matmul %5, %1, %cst_9 {dimension_numbers = #tpu.dot_dimension_numbers<[1], [0], [0], [1], [0, 0, 1, 1], [], []>} : vector<16x16xf32>, vector<16x8xf32>, vector<16x8xf32> -> vector<16x8xf32>
    %cst_10 = arith.constant dense<0.000000e+00> : vector<8x8xf32>
    %8 = tpu.matmul %0, %7, %cst_10 {dimension_numbers = #tpu.dot_dimension_numbers<[1], [0], [0], [1], [0, 0, 1, 1], [], []>} : vector<8x16xf32>, vector<16x8xf32>, vector<8x8xf32> -> vector<8x8xf32>
    %c0_i32 = arith.constant 0 : i32
    %9 = arith.cmpi eq, %arg1, %c0_i32 : i32
    %10 = arith.extui %9 : i1 to i32
    %c0_i32_11 = arith.constant 0 : i32
    %11 = arith.cmpi ne, %10, %c0_i32_11 : i32
    scf.if %11 {
      %c0_14 = arith.constant 0 : index
      %c0_15 = arith.constant 0 : index
      %c0_16 = arith.constant 0 : index
      %15 = vector.load %arg6[%c0_14, %c0_15, %c0_16] : memref<1x8x32xf32, #tpu.memory_space<vmem>>, vector<1x8x32xf32>
      %16 = vector.shape_cast %15 : vector<1x8x32xf32> to vector<8x32xf32>
      %17 = vector.shape_cast %6 : vector<8x32xf32> to vector<1x8x32xf32>
      tpu.vector_store %arg6[%c0_14, %c0_15, %c0_16], %17 {strides = array<i32>} : memref<1x8x32xf32, #tpu.memory_space<vmem>>, vector<1x8x32xf32>,
      %c0_17 = arith.constant 0 : index
      %c0_18 = arith.constant 0 : index
      %c0_19 = arith.constant 0 : index
      %18 = vector.load %arg7[%c0_17, %c0_18, %c0_19] : memref<1x8x8xf32, #tpu.memory_space<vmem>>, vector<1x8x8xf32>
      %19 = vector.shape_cast %18 : vector<1x8x8xf32> to vector<8x8xf32>
      %20 = vector.shape_cast %8 : vector<8x8xf32> to vector<1x8x8xf32>
      tpu.vector_store %arg7[%c0_17, %c0_18, %c0_19], %20 {strides = array<i32>} : memref<1x8x8xf32, #tpu.memory_space<vmem>>, vector<1x8x8xf32>,
    } else {
    }
    %c0_i32_12 = arith.constant 0 : i32
    %12 = arith.cmpi sgt, %arg1, %c0_i32_12 : i32
    %13 = arith.extui %12 : i1 to i32
    %c0_i32_13 = arith.constant 0 : i32
    %14 = arith.cmpi ne, %13, %c0_i32_13 : i32
    scf.if %14 {
      %c0_14 = arith.constant 0 : index
      %c0_15 = arith.constant 0 : index
      %c0_16 = arith.constant 0 : index
      %15 = vector.load %arg6[%c0_14, %c0_15, %c0_16] : memref<1x8x32xf32, #tpu.memory_space<vmem>>, vector<1x8x32xf32>
      %16 = vector.shape_cast %15 : vector<1x8x32xf32> to vector<8x32xf32>
      %17 = arith.addf %16, %6 : vector<8x32xf32>
      %c0_17 = arith.constant 0 : index
      %c0_18 = arith.constant 0 : index
      %c0_19 = arith.constant 0 : index
      %18 = vector.load %arg6[%c0_17, %c0_18, %c0_19] : memref<1x8x32xf32, #tpu.memory_space<vmem>>, vector<1x8x32xf32>
      %19 = vector.shape_cast %18 : vector<1x8x32xf32> to vector<8x32xf32>
      %20 = vector.shape_cast %17 : vector<8x32xf32> to vector<1x8x32xf32>
      tpu.vector_store %arg6[%c0_17, %c0_18, %c0_19], %20 {strides = array<i32>} : memref<1x8x32xf32, #tpu.memory_space<vmem>>, vector<1x8x32xf32>,
      %c0_20 = arith.constant 0 : index
      %c0_21 = arith.constant 0 : index
      %c0_22 = arith.constant 0 : index
      %21 = vector.load %arg7[%c0_20, %c0_21, %c0_22] : memref<1x8x8xf32, #tpu.memory_space<vmem>>, vector<1x8x8xf32>
      %22 = vector.shape_cast %21 : vector<1x8x8xf32> to vector<8x8xf32>
      %23 = arith.addf %22, %8 : vector<8x8xf32>
      %c0_23 = arith.constant 0 : index
      %c0_24 = arith.constant 0 : index
      %c0_25 = arith.constant 0 : index
      %24 = vector.load %arg7[%c0_23, %c0_24, %c0_25] : memref<1x8x8xf32, #tpu.memory_space<vmem>>, vector<1x8x8xf32>
      %25 = vector.shape_cast %24 : vector<1x8x8xf32> to vector<8x8xf32>
      %26 = vector.shape_cast %23 : vector<8x8xf32> to vector<1x8x8xf32>
      tpu.vector_store %arg7[%c0_23, %c0_24, %c0_25], %26 {strides = array<i32>} : memref<1x8x8xf32, #tpu.memory_space<vmem>>, vector<1x8x8xf32>,
    } else {
    }
    return
  }
  func.func @transform_0(%arg0: i32, %arg1: i32) -> (i32, i32) {
    %c0_i32 = arith.constant 0 : i32
    %c0_i32_0 = arith.constant 0 : i32
    return %c0_i32, %arg1 : i32, i32
  }
  func.func @transform_1(%arg0: i32, %arg1: i32) -> (i32, i32) {
    %c0_i32 = arith.constant 0 : i32
    %c0_i32_0 = arith.constant 0 : i32
    %c0_i32_1 = arith.constant 0 : i32
    return %c0_i32, %c0_i32_0 : i32, i32
  }
  func.func @transform_2(%arg0: i32, %arg1: i32) -> (i32, i32, i32) {
    %c0_i32 = arith.constant 0 : i32
    %c0_i32_0 = arith.constant 0 : i32
    return %arg0, %arg1, %c0_i32 : i32, i32, i32
  }
  func.func @transform_3(%arg0: i32, %arg1: i32) -> (i32, i32, i32) {
    %c0_i32 = arith.constant 0 : i32
    %c0_i32_0 = arith.constant 0 : i32
    return %arg0, %arg1, %c0_i32 : i32, i32, i32
  }
  func.func @transform_4(%arg0: i32, %arg1: i32) -> (i32, i32, i32) {
    %c0_i32 = arith.constant 0 : i32
    %c0_i32_0 = arith.constant 0 : i32
    %c0_i32_1 = arith.constant 0 : i32
    return %arg0, %c0_i32, %c0_i32_0 : i32, i32, i32
  }
  func.func @transform_5(%arg0: i32, %arg1: i32) -> (i32, i32, i32) {
    %c0_i32 = arith.constant 0 : i32
    %c0_i32_0 = arith.constant 0 : i32
    %c0_i32_1 = arith.constant 0 : i32
    return %arg0, %c0_i32, %c0_i32_0 : i32, i32, i32
  }
}

</mosaic_0001>

<llo_original>
// kernel: tpu_custom_call.1
$region0: #{tpu_custom_call.1}
  #allocation0 [shape = 'u32[]', space=smem, size = 0x4, offset = 0x4, fixed_abs, tag = 'smem constant byte address 0x4 - core index']
  #allocation1 [shape = 'u32[144,128]{1,0:T(1,128)}', space=vmem, size = 0x12000, scoped, tag = 'internal scratch']
  %s0 = inlined_call_operand.vmem [shape: f32[8,16], index: 0, kind: input, shape index: {}]
  %s1 = inlined_call_operand.vmem [shape: f32[16,8], index: 1, kind: input, shape index: {}]
  %s2 = inlined_call_operand.hbm [shape: f32[2,16,32], index: 2, kind: input, shape index: {}]
  %s3 = inlined_call_operand.hbm [shape: f32[2,16,16], index: 3, kind: input, shape index: {}]
  %s4 = inlined_call_operand.hbm [shape: f32[2,8,32], index: 4, kind: output, shape index: {0}]
  %s5 = inlined_call_operand.hbm [shape: f32[2,8,8], index: 5, kind: output, shape index: {1}]
  %6 = xla_tuple %s4, %s5
  %s7 = sld [smem:[#allocation0]]
  $region73: #{tpu_custom_call.1} parent=0
    _
  %s9 = ssub.s32 1, %s7
  %s10 = scalar_select 0, %s9, %s7
  $region1: #{tpu_custom_call.1} parent=0
    #allocation2 [shape = 'u8[16384]{0}', space=vmem, size = 0x4000, scoped, tag = 'input window, operand 2']
    #allocation3 [shape = 's32[2]{0}', space=sflag, size = 0x8, scoped, tag = 'scoped memory for tpu_custom_call.1']
    #allocation4 [shape = 's32[2]{0}', space=sflag, size = 0x8, scoped, tag = 'scoped memory for tpu_custom_call.1']
    #allocation5 [shape = 'u8[16384]{0}', space=vmem, size = 0x4000, scoped, tag = 'input window, operand 3']
    #allocation6 [shape = 's32[2]{0}', space=sflag, size = 0x8, scoped, tag = 'scoped memory for tpu_custom_call.1']
    #allocation7 [shape = 'u8[8192]{0}', space=vmem, size = 0x2000, scoped, tag = 'output window, operand 0']
    #allocation8 [shape = 'u8[8192]{0}', space=vmem, size = 0x2000, scoped, tag = 'output window, operand 1']
    #allocation9 [shape = 's32[2]{0}', space=sflag, size = 0x8, scoped, tag = 'scoped memory for tpu_custom_call.1']
    %11 = vsyncpa [#allocation3], 0
    %s12 = scalar_lea.sflag [#allocation3], 1
    %13 = vsyncpa %s12, 0
    %14 = vsyncpa [#allocation6], 0
    %s15 = scalar_lea.sflag [#allocation6], 1
    %16 = vsyncpa %s15, 0
    %17 = vsyncpa [#allocation4], 0
    %s18 = scalar_lea.sflag [#allocation4], 1
    %19 = vsyncpa %s18, 0
    %20 = vsyncpa [#allocation9], 0
    %s21 = scalar_lea.sflag [#allocation9], 1
    %22 = vsyncpa %s21, 0
    loop: start=0, step=1, limit=4
    $region2: #{tpu_custom_call.1} parent=1 // loop_pre_header
      _
    $region3: #{tpu_custom_call.1} parent=1 // loop_header
      %s24 = sphi 0, %s28
      %p25 = scmp.ge.s32.totalorder %s24, 4
      %s31 = sphi 0, %s43
      %s32 = sphi 0, %s39
      %s33 = sphi 0, %s31
      %s34 = sphi 0, %s32
      %s35 = sphi 0, %s33
      %s36 = sphi 0, %s34
      %s46 = sphi 0, %s48
      %s49 = sphi 0, %s46
      %s50 = sphi 0, %s49
      %s66 = sphi 0, %s50
      %s70 = sphi 0, %s70
      %s72 = sphi 0, %s70
      %s73 = sphi 0, %s72
      %s87 = sphi 0, %s73
      %s95 = sphi 0, %s97
      %s98 = sphi 0, %s95
      %s99 = sphi 0, %s98
      %s115 = sphi 0, %s99
      %s123 = sphi 0, %s125
      %s126 = sphi 0, %s123
      %s127 = sphi 0, %s126
      %s143 = sphi 0, %s127
      %s149 = sphi 0, %s151
      %s152 = sphi 0, %s149
      %s153 = sphi 0, %s152
      %s169 = sphi 0, %s153
      %s175 = sphi 0, %s177
      %s178 = sphi 0, %s175
      %s179 = sphi 0, %s178
      %s195 = sphi 0, %s179
    $region4: #{tpu_custom_call.1} parent=1 // loop_header_branch
      %27 = sbr.rel (%p25) target = $region8
    $region5: #{tpu_custom_call.1} parent=1 // loop_body
      %s29 = ssub.s32 %s24, 1
      %s30 = ssub.s32 %s24, 2
      %s37 = sadd.s32 1, %s32
      %p38 = scmp.ge.s32.totalorder %s37, 1
      %s39 = scalar_select %p38, 0, %s37
      %s40 = sadd.s32 1, %s31
      %s41 = scalar_select %p38, %s40, %s31
      %p42 = scmp.ge.s32.totalorder %s41, 2
      %s43 = scalar_select %p42, 0, %s41
      %s44 = ssub.s32 %s32, %s39
      %p45 = scmp.eq.s32.totalorder %s44, 0
      %s47 = sadd.s32 %s46, 1
      %s48 = scalar_select %p45, %s46, %s47
      %p51 = pneg %p45
      %p52 = scmp.eq.s32.totalorder %s24, 1
      %p53 = por %p51, %p52
      %p54 = scmp.ne.s32.totalorder %s46, %s49
      %p55 = scmp.eq.s32.totalorder %s24, 0
      %p56 = por %p54, %p55
      %p57 = scmp.ne.s32.totalorder %s46, %s49
      %p58 = scmp.eq.s32.totalorder %s29, 1
      %p59 = por %p57, %p58
      %p60 = scmp.ne.s32.totalorder %s49, %s50
      %p61 = scmp.eq.s32.totalorder %s29, 0
      %p62 = por %p60, %p61
      %p63 = scmp.ne.s32.totalorder %s49, %s50
      %p64 = scmp.eq.s32.totalorder %s30, 1
      %p65 = por %p63, %p64
      %p67 = scmp.ne.s32.totalorder %s50, %s66
      %p68 = scmp.eq.s32.totalorder %s30, 0
      %p69 = por %p67, %p68
      %s71 = sadd.s32 %s70, 1
      %p74 = scmp.eq.s32.totalorder %s24, 1
      %p75 = scmp.ne.s32.totalorder %s70, %s72
      %p76 = scmp.eq.s32.totalorder %s24, 0
      %p77 = por %p75, %p76
      %p78 = scmp.ne.s32.totalorder %s70, %s72
      %p79 = scmp.eq.s32.totalorder %s29, 1
      %p80 = por %p78, %p79
      %p81 = scmp.ne.s32.totalorder %s72, %s73
      %p82 = scmp.eq.s32.totalorder %s29, 0
      %p83 = por %p81, %p82
      %p84 = scmp.ne.s32.totalorder %s72, %s73
      %p85 = scmp.eq.s32.totalorder %s30, 1
      %p86 = por %p84, %p85
      %p88 = scmp.ne.s32.totalorder %s73, %s87
      %p89 = scmp.eq.s32.totalorder %s30, 0
      %p90 = por %p88, %p89
      %s91 = ssub.s32 %s31, %s43
      %s92 = ssub.s32 %s32, %s39
      %s93 = sor.u32 %s91, %s92
      %p94 = scmp.eq.s32.totalorder %s93, 0
      %s96 = sadd.s32 %s95, 1
      %s97 = scalar_select %p94, %s95, %s96
      %p100 = pneg %p94
      %p101 = scmp.eq.s32.totalorder %s24, 1
      %p102 = por %p100, %p101
      %p103 = scmp.ne.s32.totalorder %s95, %s98
      %p104 = scmp.eq.s32.totalorder %s24, 0
      %p105 = por %p103, %p104
      %p106 = scmp.ne.s32.totalorder %s95, %s98
      %p107 = scmp.eq.s32.totalorder %s29, 1
      %p108 = por %p106, %p107
      %p109 = scmp.ne.s32.totalorder %s98, %s99
      %p110 = scmp.eq.s32.totalorder %s29, 0
      %p111 = por %p109, %p110
      %p112 = scmp.ne.s32.totalorder %s98, %s99
      %p113 = scmp.eq.s32.totalorder %s30, 1
      %p114 = por %p112, %p113
      %p116 = scmp.ne.s32.totalorder %s99, %s115
      %p117 = scmp.eq.s32.totalorder %s30, 0
      %p118 = por %p116, %p117
      %s119 = ssub.s32 %s31, %s43
      %s120 = ssub.s32 %s32, %s39
      %s121 = sor.u32 %s119, %s120
      %p122 = scmp.eq.s32.totalorder %s121, 0
      %s124 = sadd.s32 %s123, 1
      %s125 = scalar_select %p122, %s123, %s124
      %p128 = pneg %p122
      %p129 = scmp.eq.s32.totalorder %s24, 1
      %p130 = por %p128, %p129
      %p131 = scmp.ne.s32.totalorder %s123, %s126
      %p132 = scmp.eq.s32.totalorder %s24, 0
      %p133 = por %p131, %p132
      %p134 = scmp.ne.s32.totalorder %s123, %s126
      %p135 = scmp.eq.s32.totalorder %s29, 1
      %p136 = por %p134, %p135
      %p137 = scmp.ne.s32.totalorder %s126, %s127
      %p138 = scmp.eq.s32.totalorder %s29, 0
      %p139 = por %p137, %p138
      %p140 = scmp.ne.s32.totalorder %s126, %s127
      %p141 = scmp.eq.s32.totalorder %s30, 1
      %p142 = por %p140, %p141
      %p144 = scmp.ne.s32.totalorder %s127, %s143
      %p145 = scmp.eq.s32.totalorder %s30, 0
      %p146 = por %p144, %p145
      %s147 = ssub.s32 %s31, %s43
      %p148 = scmp.eq.s32.totalorder %s147, 0
      %s150 = sadd.s32 %s149, 1
      %s151 = scalar_select %p148, %s149, %s150
      %p154 = pneg %p148
      %p155 = scmp.eq.s32.totalorder %s24, 1
      %p156 = por %p154, %p155
      %p157 = scmp.ne.s32.totalorder %s149, %s152
      %p158 = scmp.eq.s32.totalorder %s24, 0
      %p159 = por %p157, %p158
      %p160 = scmp.ne.s32.totalorder %s149, %s152
      %p161 = scmp.eq.s32.totalorder %s29, 1
      %p162 = por %p160, %p161
      %p163 = scmp.ne.s32.totalorder %s152, %s153
      %p164 = scmp.eq.s32.totalorder %s29, 0
      %p165 = por %p163, %p164
      %p166 = scmp.ne.s32.totalorder %s152, %s153
      %p167 = scmp.eq.s32.totalorder %s30, 1
      %p168 = por %p166, %p167
      %p170 = scmp.ne.s32.totalorder %s153, %s169
      %p171 = scmp.eq.s32.totalorder %s30, 0
      %p172 = por %p170, %p171
      %s173 = ssub.s32 %s31, %s43
      %p174 = scmp.eq.s32.totalorder %s173, 0
      %s176 = sadd.s32 %s175, 1
      %s177 = scalar_select %p174, %s175, %s176
      %p180 = pneg %p174
      %p181 = scmp.eq.s32.totalorder %s24, 1
      %p182 = por %p180, %p181
      %p183 = scmp.ne.s32.totalorder %s175, %s178
      %p184 = scmp.eq.s32.totalorder %s24, 0
      %p185 = por %p183, %p184
      %p186 = scmp.ne.s32.totalorder %s175, %s178
      %p187 = scmp.eq.s32.totalorder %s29, 1
      %p188 = por %p186, %p187
      %p189 = scmp.ne.s32.totalorder %s178, %s179
      %p190 = scmp.eq.s32.totalorder %s29, 0
      %p191 = por %p189, %p190
      %p192 = scmp.ne.s32.totalorder %s178, %s179
      %p193 = scmp.eq.s32.totalorder %s30, 1
      %p194 = por %p192, %p193
      %p196 = scmp.ne.s32.totalorder %s179, %s195
      %p197 = scmp.eq.s32.totalorder %s30, 0
      %p198 = por %p196, %p197
      %p199 = scmp.le.s32.totalorder 1, %s24
      %p200 = scmp.lt.s32.totalorder %s24, 3
      %p201 = pnand %p199, %p200
      %p202 = pneg %p201
      // Predicated region
      $region9: #{tpu_custom_call.1} parent=5 // pred_check
        _
      $region10: #{tpu_custom_call.1} parent=5 // pred_check_branch
        %204 = sbr.rel (%p201) target = $region12
      $region11: #{tpu_custom_call.1} parent=5 // pred_region
        %s205 = ssub.s32 %s24, 1
        // Predicated region
        $region13: #{tpu_custom_call.1} parent=11 // pred_check
          %p206 = pneg %p62
        $region14: #{tpu_custom_call.1} parent=11 // pred_check_branch
          %208 = sbr.rel (%p206) target = $region16
        $region15: #{tpu_custom_call.1} parent=11 // pred_region
          %p209 = scmp.lt.s32.totalorder %s34, 0
          %s210 = scalar_select %p209, %s34, 0
          %s211 = smul.addr %s210, 8
          %s212 = scalar_lea.vmem %s0, %s211
        $region16: #{tpu_custom_call.1} parent=11 // pred_fallthru
          _
        // Predicated region
        $region17: #{tpu_custom_call.1} parent=11 // pred_check
          %p213 = pneg %p83
        $region18: #{tpu_custom_call.1} parent=11 // pred_check_branch
          %215 = sbr.rel (%p213) target = $region20
        $region19: #{tpu_custom_call.1} parent=11 // pred_region
          _
        $region20: #{tpu_custom_call.1} parent=11 // pred_fallthru
          _
      $region12: #{tpu_custom_call.1} parent=5 // pred_fallthru
        _
      %p216 = scmp.lt.s32.totalorder %s24, 2
      // Predicated region
      $region21: #{tpu_custom_call.1} parent=5 // pred_check
        %p217 = pneg %p216
      $region22: #{tpu_custom_call.1} parent=5 // pred_check_branch
        %219 = sbr.rel (%p217) target = $region24
      $region23: #{tpu_custom_call.1} parent=5 // pred_region
        // Predicated region
        $region25: #{tpu_custom_call.1} parent=23 // pred_check
          %p220 = pneg %p105
        $region26: #{tpu_custom_call.1} parent=23 // pred_check_branch
          %222 = sbr.rel (%p220) target = $region28
        $region27: #{tpu_custom_call.1} parent=23 // pred_region
          %s223 = sand.u32 %s95, 1
          %s224 = scalar_lea.sflag [#allocation3], %s223
          %s225 = sand.u32 %s95, 1
          %s226 = smul.addr %s225, 16
          %s227 = scalar_lea.vmem [#allocation2], %s226
          %s228 = smul.u32 2, %s32
          %s230 = ssub.s32 256, 256
          %231 = vsyncadd %s224, %s230
          %s232 = smul.addr %s31, 2
          %s233 = sadd.s32 %s228, %s232
          %s234 = smul.addr %s233, 128
          %s235 = scalar_lea.hbm %s2, %s234
          %s236 = sshll.u32 %s227, 4
          %s237 = int_to_ptr.vmem [resolvable:$true] %s236
          %242 = dma.hbm_to_vmem [thread:$0]  %s235, 256, %s237, %s224, 128, 128, 8
        $region28: #{tpu_custom_call.1} parent=23 // pred_fallthru
          _
        // Predicated region
        $region29: #{tpu_custom_call.1} parent=23 // pred_check
          %p243 = pneg %p133
        $region30: #{tpu_custom_call.1} parent=23 // pred_check_branch
          %245 = sbr.rel (%p243) target = $region32
        $region31: #{tpu_custom_call.1} parent=23 // pred_region
          %s246 = sand.u32 %s123, 1
          %s247 = scalar_lea.sflag [#allocation6], %s246
          %s248 = sand.u32 %s123, 1
          %s249 = smul.addr %s248, 16
          %s250 = scalar_lea.vmem [#allocation5], %s249
          %s251 = smul.u32 2, %s32
          %s253 = ssub.s32 256, 256
          %254 = vsyncadd %s247, %s253
          %s255 = smul.addr %s31, 2
          %s256 = sadd.s32 %s251, %s255
          %s257 = smul.addr %s256, 128
          %s258 = scalar_lea.hbm %s3, %s257
          %s259 = sshll.u32 %s250, 4
          %s260 = int_to_ptr.vmem [resolvable:$true] %s259
          %265 = dma.hbm_to_vmem [thread:$0]  %s258, 256, %s260, %s247, 128, 128, 8
        $region32: #{tpu_custom_call.1} parent=23 // pred_fallthru
          _
      $region24: #{tpu_custom_call.1} parent=5 // pred_fallthru
        _
      %p266 = scmp.le.s32.totalorder 1, %s24
      %p267 = scmp.lt.s32.totalorder %s24, 3
      %p268 = pnand %p266, %p267
      %p269 = pneg %p268
      // Predicated region
      $region33: #{tpu_custom_call.1} parent=5 // pred_check
        _
      $region34: #{tpu_custom_call.1} parent=5 // pred_check_branch
        %271 = sbr.rel (%p268) target = $region36
      $region35: #{tpu_custom_call.1} parent=5 // pred_region
        %s272 = ssub.s32 %s24, 1
        %s273 = sand.u32 %s98, 1
        %s274 = scalar_lea.sflag [#allocation3], %s273
        %s275 = sand.u32 %s98, 1
        %s276 = smul.addr %s275, 16
        %s277 = scalar_lea.vmem [#allocation2], %s276
        // Predicated region
        $region37: #{tpu_custom_call.1} parent=35 // pred_check
          %p278 = pneg %p111
        $region38: #{tpu_custom_call.1} parent=35 // pred_check_branch
          %280 = sbr.rel (%p278) target = $region40
        $region39: #{tpu_custom_call.1} parent=35 // pred_region
          %281 = dma.done %s274, 256
        $region40: #{tpu_custom_call.1} parent=35 // pred_fallthru
          _
        %s282 = sand.u32 %s126, 1
        %s283 = scalar_lea.sflag [#allocation6], %s282
        %s284 = sand.u32 %s126, 1
        %s285 = smul.addr %s284, 16
        %s286 = scalar_lea.vmem [#allocation5], %s285
        // Predicated region
        $region41: #{tpu_custom_call.1} parent=35 // pred_check
          %p287 = pneg %p139
        $region42: #{tpu_custom_call.1} parent=35 // pred_check_branch
          %289 = sbr.rel (%p287) target = $region44
        $region43: #{tpu_custom_call.1} parent=35 // pred_region
          %290 = dma.done %s283, 256
        $region44: #{tpu_custom_call.1} parent=35 // pred_fallthru
          _
        %p291 = scmp.lt.s32.totalorder %s34, 0
        %s292 = scalar_select %p291, %s34, 0
        %s293 = smul.addr %s292, 8
        %s294 = scalar_lea.vmem %s0, %s293
        %p295 = pneg %p62
        %p296 = pneg %p59
        %p297 = pneg %p83
        %p298 = pneg %p80
        %s299 = sand.u32 %s98, 1
        %s300 = scalar_lea.sflag [#allocation3], %s299
        %s301 = sand.u32 %s98, 1
        %s302 = smul.addr %s301, 16
        %s303 = scalar_lea.vmem [#allocation2], %s302
        %p304 = pneg %p111
        %p305 = pneg %p108
        %s306 = sand.u32 %s126, 1
        %s307 = scalar_lea.sflag [#allocation6], %s306
        %s308 = sand.u32 %s126, 1
        %s309 = smul.addr %s308, 16
        %s310 = scalar_lea.vmem [#allocation5], %s309
        %p311 = pneg %p139
        %p312 = pneg %p136
        %p313 = pneg %p165
        %p314 = pneg %p162
        %s315 = sand.u32 %s152, 1
        %s316 = scalar_lea.sflag [#allocation4], %s315
        %s317 = sand.u32 %s152, 1
        %s318 = smul.addr %s317, 8
        %s319 = scalar_lea.vmem [#allocation7], %s318
        %p320 = pneg %p191
        %p321 = pneg %p188
        %s322 = sand.u32 %s178, 1
        %s323 = scalar_lea.sflag [#allocation9], %s322
        %s324 = sand.u32 %s178, 1
        %s325 = smul.addr %s324, 8
        %s326 = scalar_lea.vmem [#allocation8], %s325
        %p327 = scmp.lt.s32.totalorder %s34, 0
        %s328 = scalar_select %p327, %s34, 0
        %s329 = smul.addr %s328, 8
        %s330 = scalar_lea.vmem %s0, %s329
        %s331 = smul.u32 2, %s34
        %s332 = smul.u32 2, %s34
        %v333 = vld [vmem:[%s330] sm:$0xff]
        %v334 = vld [vmem:[%s1] sm:$0xff]
        %v335 = vld [vmem:[%s1 + $0x8] sm:$0xff]
        %v336 = vld [vmem:[%s277] sm:$0xff]
        %v337 = vld [vmem:[%s277 + $0x8] sm:$0xff]
        %v338 = vld [vmem:[%s286] sm:$0xff]
        %v339 = vld [vmem:[%s286 + $0x8] sm:$0xff]
        %vm340 = vcmask 130048
        %v342 = vsel %vm340, %v333, 0
        %344 = vmatprep.subr.mxu0 0.0
        %345 = vmatpush1.msra.mxu0 0.0
        %346 = vmatprep.subr.mxu0 0.0
        %347 = vmatpush1.msra.mxu0 0.0
        %348 = vmatprep.subr.mxu0 0.0
        %349 = vmatpush1.msra.mxu0 0.0
        %350 = vmatprep.subr.mxu0 0.0
        %351 = vmatpush1.msra.mxu0 0.0
        %352 = vmatprep.subr.mxu0 0.0
        %353 = vmatpush1.msra.mxu0 0.0
        %354 = vmatprep.subr.mxu0 0.0
        %355 = vmatpush1.msra.mxu0 0.0
        %356 = vmatprep.subr.mxu0 0.0
        %357 = vmatpush1.msra.mxu0 0.0
        %358 = vmatprep.subr.mxu0 0.0
        %359 = vmatpush1.msra.mxu0 0.0
        %360 = vmatprep.subr.mxu0 0.0
        %361 = vmatpush1.msra.mxu0 0.0
        %362 = vmatprep.subr.mxu0 0.0
        %363 = vmatpush1.msra.mxu0 0.0
        %364 = vmatprep.subr.mxu0 0.0
        %365 = vmatpush1.msra.mxu0 0.0
        %366 = vmatprep.subr.mxu0 0.0
        %367 = vmatpush1.msra.mxu0 0.0
        %368 = vmatprep.subr.mxu0 0.0
        %369 = vmatpush1.msra.mxu0 0.0
        %370 = vmatprep.subr.mxu0 0.0
        %371 = vmatpush1.msra.mxu0 0.0
        %372 = vmatprep.subr.mxu0 0.0
        %373 = vmatpush1.msra.mxu0 %v337
        %374 = vmatprep.subr.mxu0 0.0
        %375 = vmatpush1.msra.mxu0 %v336
        %376 = vmatprep.subr.mxu0 0.0
        %377 = vmatpush2.msra.mxu0 0.0
        %378 = vmatprep.subr.mxu0 0.0
        %379 = vmatpush2.msra.mxu0 0.0
        %380 = vmatprep.subr.mxu0 0.0
        %381 = vmatpush2.msra.mxu0 0.0
        %382 = vmatprep.subr.mxu0 0.0
        %383 = vmatpush2.msra.mxu0 0.0
        %384 = vmatprep.subr.mxu0 0.0
        %385 = vmatpush2.msra.mxu0 0.0
        %386 = vmatprep.subr.mxu0 0.0
        %387 = vmatpush2.msra.mxu0 0.0
        %388 = vmatprep.subr.mxu0 0.0
        %389 = vmatpush2.msra.mxu0 0.0
        %390 = vmatprep.subr.mxu0 0.0
        %391 = vmatpush2.msra.mxu0 0.0
        %392 = vmatprep.subr.mxu0 0.0
        %393 = vmatpush2.msra.mxu0 0.0
        %394 = vmatprep.subr.mxu0 0.0
        %395 = vmatpush2.msra.mxu0 0.0
        %396 = vmatprep.subr.mxu0 0.0
        %397 = vmatpush2.msra.mxu0 0.0
        %398 = vmatprep.subr.mxu0 0.0
        %399 = vmatpush2.msra.mxu0 0.0
        %400 = vmatprep.subr.mxu0 0.0
        %401 = vmatpush2.msra.mxu0 0.0
        %402 = vmatprep.subr.mxu0 0.0
        %403 = vmatpush2.msra.mxu0 0.0
        %404 = vmatprep.subr.mxu0 0.0
        %405 = vmatpush2.msra.mxu0 0.0
        %406 = vmatprep.subr.mxu0 0.0
        %407 = vmatpush2.msra.mxu0 0.0
        %408 = vmatprep.mubr.f32.mxu0 0.0
        %409 = vmatmul.mubr.f32.gmra.mxu0 %v342
        %v410 = vpop.f32.mrf.mxu0
        %v411 = vadd.f32 0.0, %v410
        %v412 = vpop.f32.mrf.mxu0
        %413 = vdwg.mxu0
        %v415 = vsel %vm340, %v338, 0
        %v418 = vsel %vm340, %v339, 0
        %420 = vmatprep.subr.mxu0 0.0
        %421 = vmatpush1.msra.mxu0 0.0
        %422 = vmatprep.subr.mxu0 0.0
        %423 = vmatpush1.msra.mxu0 0.0
        %424 = vmatprep.subr.mxu0 0.0
        %425 = vmatpush1.msra.mxu0 0.0
        %426 = vmatprep.subr.mxu0 0.0
        %427 = vmatpush1.msra.mxu0 0.0
        %428 = vmatprep.subr.mxu0 0.0
        %429 = vmatpush1.msra.mxu0 0.0
        %430 = vmatprep.subr.mxu0 0.0
        %431 = vmatpush1.msra.mxu0 0.0
        %432 = vmatprep.subr.mxu0 0.0
        %433 = vmatpush1.msra.mxu0 0.0
        %434 = vmatprep.subr.mxu0 0.0
        %435 = vmatpush1.msra.mxu0 0.0
        %436 = vmatprep.subr.mxu0 0.0
        %437 = vmatpush1.msra.mxu0 0.0
        %438 = vmatprep.subr.mxu0 0.0
        %439 = vmatpush1.msra.mxu0 0.0
        %440 = vmatprep.subr.mxu0 0.0
        %441 = vmatpush1.msra.mxu0 0.0
        %442 = vmatprep.subr.mxu0 0.0
        %443 = vmatpush1.msra.mxu0 0.0
        %444 = vmatprep.subr.mxu0 0.0
        %445 = vmatpush1.msra.mxu0 0.0
        %446 = vmatprep.subr.mxu0 0.0
        %447 = vmatpush1.msra.mxu0 0.0
        %448 = vmatprep.subr.mxu0 0.0
        %449 = vmatpush1.msra.mxu0 %v335
        %450 = vmatprep.subr.mxu0 0.0
        %451 = vmatpush1.msra.mxu0 %v334
        %452 = vmatprep.subr.mxu0 0.0
        %453 = vmatpush2.msra.mxu0 0.0
        %454 = vmatprep.subr.mxu0 0.0
        %455 = vmatpush2.msra.mxu0 0.0
        %456 = vmatprep.subr.mxu0 0.0
        %457 = vmatpush2.msra.mxu0 0.0
        %458 = vmatprep.subr.mxu0 0.0
        %459 = vmatpush2.msra.mxu0 0.0
        %460 = vmatprep.subr.mxu0 0.0
        %461 = vmatpush2.msra.mxu0 0.0
        %462 = vmatprep.subr.mxu0 0.0
        %463 = vmatpush2.msra.mxu0 0.0
        %464 = vmatprep.subr.mxu0 0.0
        %465 = vmatpush2.msra.mxu0 0.0
        %466 = vmatprep.subr.mxu0 0.0
        %467 = vmatpush2.msra.mxu0 0.0
        %468 = vmatprep.subr.mxu0 0.0
        %469 = vmatpush2.msra.mxu0 0.0
        %470 = vmatprep.subr.mxu0 0.0
        %471 = vmatpush2.msra.mxu0 0.0
        %472 = vmatprep.subr.mxu0 0.0
        %473 = vmatpush2.msra.mxu0 0.0
        %474 = vmatprep.subr.mxu0 0.0
        %475 = vmatpush2.msra.mxu0 0.0
        %476 = vmatprep.subr.mxu0 0.0
        %477 = vmatpush2.msra.mxu0 0.0
        %478 = vmatprep.subr.mxu0 0.0
        %479 = vmatpush2.msra.mxu0 0.0
        %480 = vmatprep.subr.mxu0 0.0
        %481 = vmatpush2.msra.mxu0 0.0
        %482 = vmatprep.subr.mxu0 0.0
        %483 = vmatpush2.msra.mxu0 0.0
        %484 = vmatprep.mubr.f32.mxu0 0.0
        %485 = vmatmul.mubr.f32.gmra.mxu0 %v415
        %v486 = vpop.f32.mrf.mxu0
        %v487 = vadd.f32 0.0, %v486
        %v488 = vpop.f32.mrf.mxu0
        %489 = vmatprep.mubr.f32.mxu0 0.0
        %490 = vmatmul.mubr.f32.gmra.mxu0 %v418
        %v491 = vpop.f32.mrf.mxu0
        %v492 = vadd.f32 0.0, %v491
        %v493 = vpop.f32.mrf.mxu0
        %494 = vdwg.mxu0
        %495 = vmatprep.subr.mxu0 0.0
        %496 = vmatpush1.msra.mxu0 0.0
        %497 = vmatprep.subr.mxu0 0.0
        %498 = vmatpush1.msra.mxu0 0.0
        %499 = vmatprep.subr.mxu0 0.0
        %500 = vmatpush1.msra.mxu0 0.0
        %501 = vmatprep.subr.mxu0 0.0
        %502 = vmatpush1.msra.mxu0 0.0
        %503 = vmatprep.subr.mxu0 0.0
        %504 = vmatpush1.msra.mxu0 0.0
        %505 = vmatprep.subr.mxu0 0.0
        %506 = vmatpush1.msra.mxu0 0.0
        %507 = vmatprep.subr.mxu0 0.0
        %508 = vmatpush1.msra.mxu0 0.0
        %509 = vmatprep.subr.mxu0 0.0
        %510 = vmatpush1.msra.mxu0 0.0
        %511 = vmatprep.subr.mxu0 0.0
        %512 = vmatpush1.msra.mxu0 0.0
        %513 = vmatprep.subr.mxu0 0.0
        %514 = vmatpush1.msra.mxu0 0.0
        %515 = vmatprep.subr.mxu0 0.0
        %516 = vmatpush1.msra.mxu0 0.0
        %517 = vmatprep.subr.mxu0 0.0
        %518 = vmatpush1.msra.mxu0 0.0
        %519 = vmatprep.subr.mxu0 0.0
        %520 = vmatpush1.msra.mxu0 0.0
        %521 = vmatprep.subr.mxu0 0.0
        %522 = vmatpush1.msra.mxu0 0.0
        %523 = vmatprep.subr.mxu0 0.0
        %524 = vmatpush1.msra.mxu0 %v492
        %525 = vmatprep.subr.mxu0 0.0
        %526 = vmatpush1.msra.mxu0 %v487
        %527 = vmatprep.subr.mxu0 0.0
        %528 = vmatpush2.msra.mxu0 0.0
        %529 = vmatprep.subr.mxu0 0.0
        %530 = vmatpush2.msra.mxu0 0.0
        %531 = vmatprep.subr.mxu0 0.0
        %532 = vmatpush2.msra.mxu0 0.0
        %533 = vmatprep.subr.mxu0 0.0
        %534 = vmatpush2.msra.mxu0 0.0
        %535 = vmatprep.subr.mxu0 0.0
        %536 = vmatpush2.msra.mxu0 0.0
        %537 = vmatprep.subr.mxu0 0.0
        %538 = vmatpush2.msra.mxu0 0.0
        %539 = vmatprep.subr.mxu0 0.0
        %540 = vmatpush2.msra.mxu0 0.0
        %541 = vmatprep.subr.mxu0 0.0
        %542 = vmatpush2.msra.mxu0 0.0
        %543 = vmatprep.subr.mxu0 0.0
        %544 = vmatpush2.msra.mxu0 0.0
        %545 = vmatprep.subr.mxu0 0.0
        %546 = vmatpush2.msra.mxu0 0.0
        %547 = vmatprep.subr.mxu0 0.0
        %548 = vmatpush2.msra.mxu0 0.0
        %549 = vmatprep.subr.mxu0 0.0
        %550 = vmatpush2.msra.mxu0 0.0
        %551 = vmatprep.subr.mxu0 0.0
        %552 = vmatpush2.msra.mxu0 0.0
        %553 = vmatprep.subr.mxu0 0.0
        %554 = vmatpush2.msra.mxu0 0.0
        %555 = vmatprep.subr.mxu0 0.0
        %556 = vmatpush2.msra.mxu0 0.0
        %557 = vmatprep.subr.mxu0 0.0
        %558 = vmatpush2.msra.mxu0 0.0
        %559 = vmatprep.mubr.f32.mxu0 0.0
        %560 = vmatmul.mubr.f32.gmra.mxu0 %v342
        %v561 = vpop.f32.mrf.mxu0
        %v562 = vadd.f32 0.0, %v561
        %v563 = vpop.f32.mrf.mxu0
        %564 = vdwg.mxu0
        %p565 = scmp.eq.s32.totalorder %s34, 0
        // Predicated region
        $region45: #{tpu_custom_call.1} parent=35 // pred_check
          %p566 = pneg %p565
        $region46: #{tpu_custom_call.1} parent=35 // pred_check_branch
          %568 = sbr.rel (%p566) target = $region48
        $region47: #{tpu_custom_call.1} parent=35 // pred_region
          %vm569 = vcmask 261120
          %570 = vst.msk [vmem:[%s319] sm:$0xff] %vm569, %v411
          %vm571 = vcmask 64512
          %572 = vst.msk [vmem:[%s326] sm:$0xff] %vm571, %v562
        $region48: #{tpu_custom_call.1} parent=35 // pred_fallthru
          _
        %p573 = scmp.gt.s32.totalorder %s34, 0
        // Predicated region
        $region49: #{tpu_custom_call.1} parent=35 // pred_check
          %p574 = pneg %p573
        $region50: #{tpu_custom_call.1} parent=35 // pred_check_branch
          %576 = sbr.rel (%p574) target = $region52
        $region51: #{tpu_custom_call.1} parent=35 // pred_region
          %v577 = vld [vmem:[%s319] sm:$0xff]
          %v578 = vadd.f32 %v577, %v411
          %vm579 = vcmask 261120
          %580 = vst.msk [vmem:[%s319] sm:$0xff] %vm579, %v578
          %v581 = vld [vmem:[%s326] sm:$0xff]
          %v582 = vadd.f32 %v581, %v562
          %vm583 = vcmask 64512
          %584 = vst.msk [vmem:[%s326] sm:$0xff] %vm583, %v582
        $region52: #{tpu_custom_call.1} parent=35 // pred_fallthru
          _
        %s585 = sand.u32 %s152, 1
        %s586 = scalar_lea.sflag [#allocation4], %s585
        %s587 = sand.u32 %s152, 1
        %s588 = smul.addr %s587, 8
        %s589 = scalar_lea.vmem [#allocation7], %s588
        %s590 = sand.u32 %s178, 1
        %s591 = scalar_lea.sflag [#allocation9], %s590
        %s592 = sand.u32 %s178, 1
        %s593 = smul.addr %s592, 8
        %s594 = scalar_lea.vmem [#allocation8], %s593
        // Predicated region
        $region53: #{tpu_custom_call.1} parent=35 // pred_check
          %p595 = pneg %p162
        $region54: #{tpu_custom_call.1} parent=35 // pred_check_branch
          %597 = sbr.rel (%p595) target = $region56
        $region55: #{tpu_custom_call.1} parent=35 // pred_region
          %s599 = ssub.s32 128, 128
          %600 = vsyncadd %s586, %s599
          %s601 = smul.addr %s33, 128
          %s602 = scalar_lea.hbm %s4, %s601
          %s604 = sshll.u32 %s589, 4
          %s605 = int_to_ptr.vmem [resolvable:$true] %s604
          %607 = dma.vmem_to_hbm [thread:$0]  %s605, 128, %s602, %s586
        $region56: #{tpu_custom_call.1} parent=35 // pred_fallthru
          _
        // Predicated region
        $region57: #{tpu_custom_call.1} parent=35 // pred_check
          %p608 = pneg %p188
        $region58: #{tpu_custom_call.1} parent=35 // pred_check_branch
          %610 = sbr.rel (%p608) target = $region60
        $region59: #{tpu_custom_call.1} parent=35 // pred_region
          %s612 = ssub.s32 128, 128
          %613 = vsyncadd %s591, %s612
          %s614 = smul.addr %s33, 128
          %s615 = scalar_lea.hbm %s5, %s614
          %s617 = sshll.u32 %s594, 4
          %s618 = int_to_ptr.vmem [resolvable:$true] %s617
          %620 = dma.vmem_to_hbm [thread:$0]  %s618, 128, %s615, %s591
        $region60: #{tpu_custom_call.1} parent=35 // pred_fallthru
          _
      $region36: #{tpu_custom_call.1} parent=5 // pred_fallthru
        _
      %p621 = scmp.le.s32.totalorder 2, %s24
      // Predicated region
      $region61: #{tpu_custom_call.1} parent=5 // pred_check
        %p622 = pneg %p621
      $region62: #{tpu_custom_call.1} parent=5 // pred_check_branch
        %624 = sbr.rel (%p622) target = $region64
      $region63: #{tpu_custom_call.1} parent=5 // pred_region
        %s625 = ssub.s32 %s24, 2
        // Predicated region
        $region65: #{tpu_custom_call.1} parent=63 // pred_check
          %p626 = pneg %p168
        $region66: #{tpu_custom_call.1} parent=63 // pred_check_branch
          %628 = sbr.rel (%p626) target = $region68
        $region67: #{tpu_custom_call.1} parent=63 // pred_region
          %s629 = sand.u32 %s153, 1
          %s630 = scalar_lea.sflag [#allocation4], %s629
          %s631 = sand.u32 %s153, 1
          %s632 = smul.addr %s631, 8
          %s633 = scalar_lea.vmem [#allocation7], %s632
          %634 = dma.done %s630, 128
        $region68: #{tpu_custom_call.1} parent=63 // pred_fallthru
          _
        // Predicated region
        $region69: #{tpu_custom_call.1} parent=63 // pred_check
          %p635 = pneg %p194
        $region70: #{tpu_custom_call.1} parent=63 // pred_check_branch
          %637 = sbr.rel (%p635) target = $region72
        $region71: #{tpu_custom_call.1} parent=63 // pred_region
          %s638 = sand.u32 %s179, 1
          %s639 = scalar_lea.sflag [#allocation9], %s638
          %s640 = sand.u32 %s179, 1
          %s641 = smul.addr %s640, 8
          %s642 = scalar_lea.vmem [#allocation8], %s641
          %643 = dma.done %s639, 128
        $region72: #{tpu_custom_call.1} parent=63 // pred_fallthru
          _
      $region64: #{tpu_custom_call.1} parent=5 // pred_fallthru
        _
    $region6: #{tpu_custom_call.1} parent=1 // loop_footer
      %s28 = sadd.s32 1, %s24
    $region7: #{tpu_custom_call.1} parent=1 // loop_footer_branch
      %23 = sbr.rel target = $region3
    $region8: #{tpu_custom_call.1} parent=1 // loop_exit
      _
    %644 = vsyncpa [#allocation3], 1
    %s645 = scalar_lea.sflag [#allocation3], 1
    %646 = vsyncpa %s645, 1
    %647 = vsyncpa [#allocation6], 1
    %s648 = scalar_lea.sflag [#allocation6], 1
    %649 = vsyncpa %s648, 1
    %650 = vsyncpa [#allocation4], 1
    %s651 = scalar_lea.sflag [#allocation4], 1
    %652 = vsyncpa %s651, 1
    %653 = vsyncpa [#allocation9], 1
    %s654 = scalar_lea.sflag [#allocation9], 1
    %655 = vsyncpa %s654, 1

</llo_original>
